<compile_context>
chip_gen: v7x
topology: tpu7x:2x2x1
jax: 0.10.0
libtpu: 0.0.40
codegen_flags: <defaults>
</compile_context>

<pallas_src>
import functools

import jax
import jax.numpy as jnp
from jax.experimental import pallas as pl
from jax.experimental.pallas import tpu as pltpu

_LANE = 128
_SUBLANE = 8


def _round_up(n, m):
    return ((n + m - 1) // m) * m


def _mlp_kernel(x_ref, w1_ref, b1_ref, w2_ref, b2_ref, out_ref):
    # Layer 1: bf16 (or f32) matmul inputs, f32 accumulation on the MXU.
    h = jnp.dot(x_ref[...], w1_ref[...], preferred_element_type=jnp.float32)
    # Bias-add + ReLU epilogue in f32 on the VPU (v5e has no bf16 VPU).
    h = jnp.maximum(h + b1_ref[...], 0.0)
    # Layer 2: cast activations back to the matmul dtype, accumulate in f32.
    y = jnp.dot(h.astype(w2_ref.dtype), w2_ref[...],
                preferred_element_type=jnp.float32)
    out_ref[...] = (y + b2_ref[...]).astype(out_ref.dtype)


@functools.partial(jax.jit, static_argnames=("block_b", "use_bf16"))
def net_forward(x, w1, b1, w2, b2, *, block_b=512, use_bf16=True):
    """Fused forward of Net: relu(x @ W1 + b1) @ W2 + b2.

    x:  (B, n_feature) float32
    w1: (n_feature, n_hidden)   (transposed from torch's (n_hidden, n_feature))
    b1: (n_hidden,)
    w2: (n_hidden, n_output)
    b2: (n_output,)
    Returns (B, n_output) float32.
    """
    B, F = x.shape
    Fw, H = w1.shape
    Hw, O = w2.shape
    assert F == Fw and H == Hw, "weight shapes inconsistent with input"

    mm_dtype = jnp.bfloat16 if use_bf16 else jnp.float32

    # --- lane-dense output: pad output feature dim to a multiple of 128 -----
    O_pad = _round_up(O, _LANE)

    # --- batch tiling: multiple of 8 sublanes, capped so 2x-buffered tiles fit ---
    TB = min(block_b, _round_up(B, _SUBLANE))
    TB = _round_up(TB, _SUBLANE)
    B_pad = _round_up(B, TB)

    # --- pad / cast operands ------------------------------------------------
    x_p = x if B_pad == B else jnp.pad(x, ((0, B_pad - B), (0, 0)))
    x_p = x_p.astype(mm_dtype)
    w1_c = w1.astype(mm_dtype)

    if O_pad != O:
        w2_p = jnp.pad(w2, ((0, 0), (0, O_pad - O)))
        b2_p = jnp.pad(b2, ((0, O_pad - O),))
    else:
        w2_p, b2_p = w2, b2
    w2_c = w2_p.astype(mm_dtype)

    b1_2d = b1.reshape(1, H).astype(jnp.float32)
    b2_2d = b2_p.reshape(1, O_pad).astype(jnp.float32)

    grid = (B_pad // TB,)

    out = pl.pallas_call(
        _mlp_kernel,
        out_shape=jax.ShapeDtypeStruct((B_pad, O_pad), jnp.float32),
        grid_spec=pltpu.PrefetchScalarGridSpec(
            num_scalar_prefetch=0,
            grid=grid,
            in_specs=[
                # x: pipelined (double-buffered) over batch tiles.
                pl.BlockSpec((TB, F), lambda i: (i, 0)),
                # Weights / biases: constant index_map -> DMA'd once, VMEM-resident.
                pl.BlockSpec((F, H), lambda i: (0, 0)),
                pl.BlockSpec((1, H), lambda i: (0, 0)),
                pl.BlockSpec((H, O_pad), lambda i: (0, 0)),
                pl.BlockSpec((1, O_pad), lambda i: (0, 0)),
            ],
            out_specs=pl.BlockSpec((TB, O_pad), lambda i: (i, 0)),
        ),
        compiler_params=pltpu.CompilerParams(
            # Independent batch tiles: shard across TensorCores (v7x megacore).
            dimension_semantics=("parallel",),
        ),
    )(x_p, w1_c, b1_2d, w2_c, b2_2d)

    # Strip batch padding and the lane padding of the output dim.
    return out[:B, :O]


def init_params(key, n_feature, n_hidden, n_output):
    """Deterministic init mimicking torch.nn.Linear default (uniform +/- 1/sqrt(fan_in))."""
    k1, k2, k3, k4 = jax.random.split(key, 4)
    lim1 = 1.0 / jnp.sqrt(n_feature)
    lim2 = 1.0 / jnp.sqrt(n_hidden)
    # Weights stored already transposed to (in, out) layout for the kernel.
    w1 = jax.random.uniform(k1, (n_feature, n_hidden), jnp.float32, -lim1, lim1)
    b1 = jax.random.uniform(k2, (n_hidden,), jnp.float32, -lim1, lim1)
    w2 = jax.random.uniform(k3, (n_hidden, n_output), jnp.float32, -lim2, lim2)
    b2 = jax.random.uniform(k4, (n_output,), jnp.float32, -lim2, lim2)
    return w1, b1, w2, b2


if __name__ == "__main__":
    key = jax.random.PRNGKey(0)
    n_feature, n_hidden, n_output = 16, 32, 8
    batch = 8

    kx, kp = jax.random.split(key)
    x = jax.random.normal(kx, (batch, n_feature), jnp.float32)
    w1, b1, w2, b2 = init_params(kp, n_feature, n_hidden, n_output)

    out = net_forward(x, w1, b1, w2, b2)
    out = jax.block_until_ready(out)
    assert out.shape == (batch, n_output)

    # Reference with the same bf16 rounding of the matmul inputs (f32 accumulate),
    # matching the kernel's numerics; epilogue in f32.
    xb = x.astype(jnp.bfloat16).astype(jnp.float32)
    w1b = w1.astype(jnp.bfloat16).astype(jnp.float32)
    w2b = w2.astype(jnp.bfloat16).astype(jnp.float32)
    h = jnp.maximum(xb @ w1b + b1, 0.0)
    ref = h.astype(jnp.bfloat16).astype(jnp.float32) @ w2b + b2
    assert jnp.allclose(out, ref, atol=2e-2, rtol=2e-2), (
        f"max abs err {jnp.max(jnp.abs(out - ref))}")

    # Loose sanity check against the pure-f32 math of the PyTorch module.
    ref_f32 = jnp.maximum(x @ w1 + b1, 0.0) @ w2 + b2
    assert jnp.allclose(out, ref_f32, atol=5e-2, rtol=5e-2)

    print("KERNEL_OK")
</pallas_src>

<mosaic_0001>
module attributes {stable_mosaic.version = 11 : i64} {
  func.func @_mlp_kernel(%arg0: i32, %arg1: memref<8x16xbf16, #tpu.memory_space<vmem>>, %arg2: memref<16x32xbf16, #tpu.memory_space<vmem>>, %arg3: memref<1x32xf32, #tpu.memory_space<vmem>>, %arg4: memref<32x128xbf16, #tpu.memory_space<vmem>>, %arg5: memref<1x128xf32, #tpu.memory_space<vmem>>, %arg6: memref<8x128xf32, #tpu.memory_space<vmem>>) attributes {dimension_semantics = [#tpu.dimension_semantics<parallel>], iteration_bounds = array<i64: 1>, scalar_prefetch = 0 : i64, scratch_operands = 0 : i64, tpu.core_type = #tpu.core_type<tc>, window_params = [{transform_indices = @transform_0, window_bounds = array<i64: 8, 16>}, {pipeline_mode = #tpu.pipeline_mode<synchronous>, transform_indices = @transform_1, window_bounds = array<i64: 16, 32>}, {pipeline_mode = #tpu.pipeline_mode<synchronous>, transform_indices = @transform_2, window_bounds = array<i64: 1, 32>}, {pipeline_mode = #tpu.pipeline_mode<synchronous>, transform_indices = @transform_3, window_bounds = array<i64: 32, 128>}, {pipeline_mode = #tpu.pipeline_mode<synchronous>, transform_indices = @transform_4, window_bounds = array<i64: 1, 128>}, {transform_indices = @transform_5, window_bounds = array<i64: 8, 128>}]} {
    %c0 = arith.constant 0 : index
    %c0_0 = arith.constant 0 : index
    %0 = vector.load %arg1[%c0, %c0_0] : memref<8x16xbf16, #tpu.memory_space<vmem>>, vector<8x16xbf16>
    %c0_1 = arith.constant 0 : index
    %c0_2 = arith.constant 0 : index
    %1 = vector.load %arg2[%c0_1, %c0_2] : memref<16x32xbf16, #tpu.memory_space<vmem>>, vector<16x32xbf16>
    %cst = arith.constant dense<0.000000e+00> : vector<8x32xf32>
    %2 = tpu.matmul %0, %1, %cst {dimension_numbers = #tpu.dot_dimension_numbers<[1], [0], [0], [1], [0, 0, 1, 1], [], []>} : vector<8x16xbf16>, vector<16x32xbf16>, vector<8x32xf32> -> vector<8x32xf32>
    %c0_3 = arith.constant 0 : index
    %c0_4 = arith.constant 0 : index
    %3 = vector.load %arg3[%c0_3, %c0_4] : memref<1x32xf32, #tpu.memory_space<vmem>>, vector<1x32xf32>
    %4 = vector.broadcast %3 : vector<1x32xf32> to vector<8x32xf32>
    %5 = arith.addf %2, %4 : vector<8x32xf32>
    %cst_5 = arith.constant 0.000000e+00 : f32
    %6 = vector.broadcast %cst_5 : f32 to vector<8x32xf32>
    %7 = arith.maximumf %5, %6 : vector<8x32xf32>
    %8 = arith.truncf %7 : vector<8x32xf32> to vector<8x32xbf16>
    %c0_6 = arith.constant 0 : index
    %c0_7 = arith.constant 0 : index
    %9 = vector.load %arg4[%c0_6, %c0_7] : memref<32x128xbf16, #tpu.memory_space<vmem>>, vector<32x128xbf16>
    %cst_8 = arith.constant dense<0.000000e+00> : vector<8x128xf32>
    %10 = tpu.matmul %8, %9, %cst_8 {dimension_numbers = #tpu.dot_dimension_numbers<[1], [0], [0], [1], [0, 0, 1, 1], [], []>} : vector<8x32xbf16>, vector<32x128xbf16>, vector<8x128xf32> -> vector<8x128xf32>
    %c0_9 = arith.constant 0 : index
    %c0_10 = arith.constant 0 : index
    %11 = vector.load %arg5[%c0_9, %c0_10] : memref<1x128xf32, #tpu.memory_space<vmem>>, vector<1x128xf32>
    %12 = vector.broadcast %11 : vector<1x128xf32> to vector<8x128xf32>
    %13 = arith.addf %10, %12 : vector<8x128xf32>
    %c0_11 = arith.constant 0 : index
    %c0_12 = arith.constant 0 : index
    %14 = vector.load %arg6[%c0_11, %c0_12] : memref<8x128xf32, #tpu.memory_space<vmem>>, vector<8x128xf32>
    tpu.vector_store %arg6[%c0_11, %c0_12], %13 {strides = array<i32>} : memref<8x128xf32, #tpu.memory_space<vmem>>, vector<8x128xf32>,
    return
  }
  func.func @transform_0(%arg0: i32) -> (i32, i32) {
    %c0_i32 = arith.constant 0 : i32
    %c0_i32_0 = arith.constant 0 : i32
    return %arg0, %c0_i32 : i32, i32
  }
  func.func @transform_1(%arg0: i32) -> (i32, i32) {
    %c0_i32 = arith.constant 0 : i32
    %c0_i32_0 = arith.constant 0 : i32
    %c0_i32_1 = arith.constant 0 : i32
    return %c0_i32, %c0_i32_0 : i32, i32
  }
  func.func @transform_2(%arg0: i32) -> (i32, i32) {
    %c0_i32 = arith.constant 0 : i32
    %c0_i32_0 = arith.constant 0 : i32
    %c0_i32_1 = arith.constant 0 : i32
    return %c0_i32, %c0_i32_0 : i32, i32
  }
  func.func @transform_3(%arg0: i32) -> (i32, i32) {
    %c0_i32 = arith.constant 0 : i32
    %c0_i32_0 = arith.constant 0 : i32
    %c0_i32_1 = arith.constant 0 : i32
    return %c0_i32, %c0_i32_0 : i32, i32
  }
  func.func @transform_4(%arg0: i32) -> (i32, i32) {
    %c0_i32 = arith.constant 0 : i32
    %c0_i32_0 = arith.constant 0 : i32
    %c0_i32_1 = arith.constant 0 : i32
    return %c0_i32, %c0_i32_0 : i32, i32
  }
  func.func @transform_5(%arg0: i32) -> (i32, i32) {
    %c0_i32 = arith.constant 0 : i32
    %c0_i32_0 = arith.constant 0 : i32
    return %arg0, %c0_i32 : i32, i32
  }
}

</mosaic_0001>

<llo_original>
// kernel: net_forward.1
$region0: #{net_forward.1}
  #allocation0 [shape = 'u32[]', space=smem, size = 0x4, offset = 0x4, fixed_abs, tag = 'smem constant byte address 0x4 - core index']
  #allocation1 [shape = 'u32[144,128]{1,0:T(1,128)}', space=vmem, size = 0x12000, scoped, tag = 'internal scratch']
  %s0 = inlined_call_operand.vmem [shape: bf16[8,16], index: 0, kind: input, shape index: {}]
  %s1 = inlined_call_operand.vmem [shape: bf16[16,32], index: 1, kind: input, shape index: {}]
  %s2 = inlined_call_operand.vmem [shape: f32[1,32], index: 2, kind: input, shape index: {}]
  %s3 = inlined_call_operand.vmem [shape: bf16[32,128], index: 3, kind: input, shape index: {}]
  %s4 = inlined_call_operand.vmem [shape: f32[1,128], index: 4, kind: input, shape index: {}]
  %s5 = inlined_call_operand.hbm [shape: f32[8,128], index: 5, kind: output, shape index: {}]
  %s6 = sld [smem:[#allocation0]]
  $region30: #{net_forward.1} parent=0
    _
  %s8 = ssub.s32 1, %s6
  %s9 = scalar_select 0, %s8, %s6
  $region1: #{net_forward.1} parent=0
    #allocation2 [shape = 'u8[4096]{0}', space=vmem, size = 0x1000, scoped, tag = 'output window, operand 0, single buffered']
    #allocation3 [shape = 's32[1]{0}', space=sflag, size = 0x4, scoped, tag = 'scoped memory for net_forward.1']
    %10 = vsyncpa [#allocation3], 0
    // Predicated region
    $region2: #{net_forward.1} parent=1 // pred_check
      _
    $region3: #{net_forward.1} parent=1 // pred_check_branch
      %12 = sbr.rel (0) target = $region5
    $region4: #{net_forward.1} parent=1 // pred_region
      _
    $region5: #{net_forward.1} parent=1 // pred_fallthru
      _
    // Predicated region
    $region6: #{net_forward.1} parent=1 // pred_check
      _
    $region7: #{net_forward.1} parent=1 // pred_check_branch
      %14 = sbr.rel (0) target = $region9
    $region8: #{net_forward.1} parent=1 // pred_region
      _
    $region9: #{net_forward.1} parent=1 // pred_fallthru
      _
    // Predicated region
    $region10: #{net_forward.1} parent=1 // pred_check
      _
    $region11: #{net_forward.1} parent=1 // pred_check_branch
      %16 = sbr.rel (0) target = $region13
    $region12: #{net_forward.1} parent=1 // pred_region
      _
    $region13: #{net_forward.1} parent=1 // pred_fallthru
      _
    // Predicated region
    $region14: #{net_forward.1} parent=1 // pred_check
      _
    $region15: #{net_forward.1} parent=1 // pred_check_branch
      %18 = sbr.rel (0) target = $region17
    $region16: #{net_forward.1} parent=1 // pred_region
      _
    $region17: #{net_forward.1} parent=1 // pred_fallthru
      _
    // Predicated region
    $region18: #{net_forward.1} parent=1 // pred_check
      _
    $region19: #{net_forward.1} parent=1 // pred_check_branch
      %20 = sbr.rel (0) target = $region21
    $region20: #{net_forward.1} parent=1 // pred_region
      _
    $region21: #{net_forward.1} parent=1 // pred_fallthru
      _
    %v22 = vld [vmem:[%s0] sm:$0xf]
    %v23 = vld [vmem:[%s1] sm:$0xf]
    %v24 = vld [vmem:[%s1 + $0x4] sm:$0xf]
    %v25 = vld [vmem:[%s2] sm:$0x1]
    %v27 = vlaneseq
    %v28 = vshrl.u32 %v27, 7
    %v29 = vsub.s32 0, %v28
    %v30 = vrot.slane %v25, %v29
    %v34 = vunpack.c.l.b16 %v23
    %v35 = vunpack.c.l.b16 %v24
    %v36 = vpack.c.b16 %v35, %v34
    %vm38 = vcmask 130048
    %v40 = vsel %vm38, %v22, 0
    %42 = vmatprep.subr.bf16.mxu0 0
    %43 = vmatpush1.bf16.msra.mxu0 %v36
    %44 = vmatprep.subr.bf16.mxu0 0
    %45 = vmatpush1.bf16.msra.mxu0 0
    %46 = vmatprep.subr.bf16.mxu0 0
    %47 = vmatpush1.bf16.msra.mxu0 0
    %48 = vmatprep.subr.bf16.mxu0 0
    %49 = vmatpush1.bf16.msra.mxu0 0
    %50 = vmatprep.subr.bf16.mxu0 0
    %51 = vmatpush1.bf16.msra.mxu0 0
    %52 = vmatprep.subr.bf16.mxu0 0
    %53 = vmatpush1.bf16.msra.mxu0 0
    %54 = vmatprep.subr.bf16.mxu0 0
    %55 = vmatpush1.bf16.msra.mxu0 0
    %56 = vmatprep.subr.bf16.mxu0 0
    %57 = vmatpush1.bf16.msra.mxu0 0
    %58 = vmatprep.subr.bf16.mxu0 0
    %59 = vmatpush1.bf16.msra.mxu0 0
    %60 = vmatprep.subr.bf16.mxu0 0
    %61 = vmatpush1.bf16.msra.mxu0 0
    %62 = vmatprep.subr.bf16.mxu0 0
    %63 = vmatpush1.bf16.msra.mxu0 0
    %64 = vmatprep.subr.bf16.mxu0 0
    %65 = vmatpush1.bf16.msra.mxu0 0
    %66 = vmatprep.subr.bf16.mxu0 0
    %67 = vmatpush1.bf16.msra.mxu0 0
    %68 = vmatprep.subr.bf16.mxu0 0
    %69 = vmatpush1.bf16.msra.mxu0 0
    %70 = vmatprep.subr.bf16.mxu0 0
    %71 = vmatpush1.bf16.msra.mxu0 0
    %72 = vmatprep.subr.bf16.mxu0 0
    %73 = vmatpush1.bf16.msra.mxu0 0
    %74 = vmatprep.mubr.bf16.mxu0 0
    %75 = vmatmul.mubr.bf16.gmra.mrb[0].mxu0 %v40
    %v76 = vpop.f32.mrb[0].mxu0
    %v77 = vadd.f32 %v30, %v76
    %v78 = vpop.f32.mrb[0].mxu0
    %v79 = vpop.f32.mrb[0].mxu0
    %v80 = vpop.f32.mrb[0].mxu0
    %81 = vdwg.mxu0
    %v82 = vmax.f32 %v77, 0.0
    %v83 = vpack.c.bf16 %v82, %v82
    %v84 = vld [vmem:[%s3] sm:$0xf]
    %v85 = vld [vmem:[%s3 + $0x4] sm:$0xf]
    %v86 = vld [vmem:[%s3 + $0x8] sm:$0xf]
    %v87 = vld [vmem:[%s3 + $0xc] sm:$0xf]
    %v88 = vld [vmem:[%s4] sm:$0x1]
    %v90 = vlaneseq
    %v91 = vshrl.u32 %v90, 7
    %v92 = vsub.s32 0, %v91
    %v93 = vrot.slane %v88, %v92
    %v99 = vunpack.c.l.b16 %v84
    %v100 = vunpack.c.l.b16 %v85
    %v101 = vunpack.c.l.b16 %v86
    %v102 = vunpack.c.l.b16 %v87
    %v103 = vpack.c.b16 %v100, %v99
    %v104 = vpack.c.b16 %v102, %v101
    %vm107 = vcmask 261120
    %v109 = vsel %vm107, %v83, 0
    %111 = vmatprep.subr.bf16.mxu0 0
    %112 = vmatpush1.bf16.msra.mxu0 %v103
    %113 = vmatprep.subr.bf16.mxu0 0
    %114 = vmatpush1.bf16.msra.mxu0 %v104
    %115 = vmatprep.subr.bf16.mxu0 0
    %116 = vmatpush1.bf16.msra.mxu0 0
    %117 = vmatprep.subr.bf16.mxu0 0
    %118 = vmatpush1.bf16.msra.mxu0 0
    %119 = vmatprep.subr.bf16.mxu0 0
    %120 = vmatpush1.bf16.msra.mxu0 0
    %121 = vmatprep.subr.bf16.mxu0 0
    %122 = vmatpush1.bf16.msra.mxu0 0
    %123 = vmatprep.subr.bf16.mxu0 0
    %124 = vmatpush1.bf16.msra.mxu0 0
    %125 = vmatprep.subr.bf16.mxu0 0
    %126 = vmatpush1.bf16.msra.mxu0 0
    %127 = vmatprep.subr.bf16.mxu0 0
    %128 = vmatpush1.bf16.msra.mxu0 0
    %129 = vmatprep.subr.bf16.mxu0 0
    %130 = vmatpush1.bf16.msra.mxu0 0
    %131 = vmatprep.subr.bf16.mxu0 0
    %132 = vmatpush1.bf16.msra.mxu0 0
    %133 = vmatprep.subr.bf16.mxu0 0
    %134 = vmatpush1.bf16.msra.mxu0 0
    %135 = vmatprep.subr.bf16.mxu0 0
    %136 = vmatpush1.bf16.msra.mxu0 0
    %137 = vmatprep.subr.bf16.mxu0 0
    %138 = vmatpush1.bf16.msra.mxu0 0
    %139 = vmatprep.subr.bf16.mxu0 0
    %140 = vmatpush1.bf16.msra.mxu0 0
    %141 = vmatprep.subr.bf16.mxu0 0
    %142 = vmatpush1.bf16.msra.mxu0 0
    %143 = vmatprep.mubr.bf16.mxu0 0
    %144 = vmatmul.mubr.bf16.gmra.mrb[0].mxu0 %v109
    %v145 = vpop.f32.mrb[0].mxu0
    %v146 = vadd.f32 %v93, %v145
    %v147 = vpop.f32.mrb[0].mxu0
    %v148 = vpop.f32.mrb[0].mxu0
    %v149 = vpop.f32.mrb[0].mxu0
    %150 = vdwg.mxu0
    %151 = vst [vmem:[#allocation2] sm:$0xff] %v146
    // Predicated region
    $region22: #{net_forward.1} parent=1 // pred_check
      _
    $region23: #{net_forward.1} parent=1 // pred_check_branch
      %153 = sbr.rel (0) target = $region25
    $region24: #{net_forward.1} parent=1 // pred_region
      %s155 = ssub.s32 128, 128
      %156 = vsyncadd [#allocation3], %s155
      %s158 = sshll.u32 [#allocation2], 4
      %s159 = int_to_ptr.vmem [resolvable:$true] %s158
      %161 = dma.vmem_to_hbm [thread:$0]  %s159, 128, %s5, [#allocation3]
    $region25: #{net_forward.1} parent=1 // pred_fallthru
      _
    // Predicated region
    $region26: #{net_forward.1} parent=1 // pred_check
      _
    $region27: #{net_forward.1} parent=1 // pred_check_branch
      %163 = sbr.rel (0) target = $region29
    $region28: #{net_forward.1} parent=1 // pred_region
      %164 = dma.done [#allocation3], 128
    $region29: #{net_forward.1} parent=1 // pred_fallthru
      _
    %165 = vsyncpa [#allocation3], 1

</llo_original>
